<compile_context>
chip_gen: v6e
topology: v6e:2x2x1
jax: 0.10.0
libtpu: 0.0.40
codegen_flags: <defaults>
</compile_context>

<pallas_src>
import functools

import jax
import jax.numpy as jnp
from jax.experimental import pallas as pl
from jax.experimental.pallas import tpu as pltpu


def _fused_kernel(cin, x_ref, wb_ref, o_ref):
    # x:  (Cin, M) VMEM   -- channels on sublanes, pixels on lanes
    # wb: (Cin+1,) SMEM   -- [w_eff[0..Cin-1], b_eff]
    # o:  (1, M)  VMEM
    # Unrolled skinny contraction: scalar (sreg) x vector (VPU) accumulates.
    acc = x_ref[0:1, :] * wb_ref[0]
    for c in range(1, cin):
        acc = acc + x_ref[c:c + 1, :] * wb_ref[c]
    o_ref[...] = jnp.maximum(acc + wb_ref[cin], 0.0)


def fold_params(w_convt, b_convt, w_lin, b_lin):
    """One-time parameter fold (call at init, NOT per forward).

    w_convt: (Cin, Cout, 1, 1)  PyTorch ConvTranspose2d weight layout
    b_convt: (Cout,)
    w_lin:   (1, Cout)          PyTorch Linear weight layout (out, in)
    b_lin:   (1,)
    Returns a packed (Cin+1,) f32 array: [w_eff..., b_eff].
    """
    cin, cout = w_convt.shape[0], w_convt.shape[1]
    w1 = w_convt.reshape(cin, cout).astype(jnp.float32)          # (Cin, Cout)
    w_eff = (w1 @ w_lin.T.astype(jnp.float32)).reshape(cin)       # (Cin,)
    b_eff = (b_convt.astype(jnp.float32) @ w_lin.T.astype(jnp.float32)
             + b_lin.astype(jnp.float32)).reshape(1)              # (1,)
    return jnp.concatenate([w_eff, b_eff]).astype(jnp.float32)    # (Cin+1,)


@functools.partial(jax.jit, static_argnames=())
def model_forward(x_nchw, wb_packed):
    """x_nchw: (1, Cin, H, W) f32, wb_packed: (Cin+1,) f32 from fold_params.

    Returns NHWC output of shape (1, H, W, 1).
    """
    n, cin, h, w = x_nchw.shape
    assert n == 1  # TODO(synk): for N > 1 add a "parallel" batch grid axis.
    m = h * w

    # Free reshape of NCHW (no transpose): channels -> sublanes, pixels -> lanes.
    x2d = x_nchw.reshape(cin, m).astype(jnp.float32)

    out_t = pl.pallas_call(
        functools.partial(_fused_kernel, cin),
        out_shape=jax.ShapeDtypeStruct((1, m), jnp.float32),
        in_specs=[
            pl.BlockSpec(memory_space=pltpu.MemorySpace.VMEM),   # x2d (Cin, M)
            pl.BlockSpec(memory_space=pltpu.MemorySpace.SMEM),   # wb  (Cin+1,)
        ],
        out_specs=pl.BlockSpec(memory_space=pltpu.MemorySpace.VMEM),
    )(x2d, wb_packed)

    # (1, M) -> NHWC (N, H, W, 1); free reshape, no slicing.
    return out_t.reshape(n, h, w, 1)


if __name__ == "__main__":
    key = jax.random.PRNGKey(0)
    k_x, k_w1, k_b1, k_w2, k_b2 = jax.random.split(key, 5)

    N, Cin, H, W = 1, 7, 15, 15
    Cout = 10

    x1 = jax.random.normal(k_x, (N, Cin, H, W), jnp.float32)

    # Deterministic parameter init (uniform, roughly PyTorch defaults).
    bound1 = 1.0 / (Cin ** 0.5)          # ConvTranspose2d: fan_in = Cin*kH*kW = 7
    w_convt = jax.random.uniform(k_w1, (Cin, Cout, 1, 1), jnp.float32,
                                 -bound1, bound1)
    b_convt = jax.random.uniform(k_b1, (Cout,), jnp.float32, -bound1, bound1)

    bound2 = 1.0 / (Cout ** 0.5)         # Linear: fan_in = 10
    w_lin = jax.random.uniform(k_w2, (1, Cout), jnp.float32, -bound2, bound2)
    b_lin = jax.random.uniform(k_b2, (1,), jnp.float32, -bound2, bound2)

    # One-time fold (init-time), then a single Pallas call per forward.
    wb_packed = jax.block_until_ready(fold_params(w_convt, b_convt, w_lin, b_lin))

    out = model_forward(x1, wb_packed)
    jax.block_until_ready(out)

    # Reference: unfolded two-matmul path in plain JAX (channels-last semantics).
    x_rows = jnp.transpose(x1, (0, 2, 3, 1)).reshape(-1, Cin)
    ref = jnp.maximum(
        (x_rows @ w_convt.reshape(Cin, Cout) + b_convt) @ w_lin.T + b_lin, 0.0
    ).reshape(N, H, W, 1)

    assert out.shape == (N, H, W, 1)
    assert jnp.allclose(out, ref, atol=1e-5, rtol=1e-4)

    print("KERNEL_OK")
</pallas_src>

<mosaic_0001>
module attributes {stable_mosaic.version = 11 : i64} {
  func.func @_fused_kernel(%arg0: memref<7x225xf32, #tpu.memory_space<vmem>>, %arg1: memref<8xf32, #tpu.memory_space<smem>>, %arg2: memref<1x225xf32, #tpu.memory_space<vmem>>) attributes {dimension_semantics = [], scalar_prefetch = 0 : i64, scratch_operands = 0 : i64, tpu.core_type = #tpu.core_type<tc>} {
    %c0 = arith.constant 0 : index
    %c0_0 = arith.constant 0 : index
    %0 = vector.load %arg0[%c0, %c0_0] : memref<7x225xf32, #tpu.memory_space<vmem>>, vector<1x225xf32>
    %c0_1 = arith.constant 0 : index
    %1 = memref.load %arg1[%c0_1] : memref<8xf32, #tpu.memory_space<smem>>
    %2 = vector.broadcast %1 : f32 to vector<1x225xf32>
    %3 = arith.mulf %0, %2 : vector<1x225xf32>
    %c1 = arith.constant 1 : index
    %c0_2 = arith.constant 0 : index
    %4 = vector.load %arg0[%c1, %c0_2] : memref<7x225xf32, #tpu.memory_space<vmem>>, vector<1x225xf32>
    %c1_3 = arith.constant 1 : index
    %5 = memref.load %arg1[%c1_3] : memref<8xf32, #tpu.memory_space<smem>>
    %6 = vector.broadcast %5 : f32 to vector<1x225xf32>
    %7 = arith.mulf %4, %6 : vector<1x225xf32>
    %8 = arith.addf %3, %7 : vector<1x225xf32>
    %c2 = arith.constant 2 : index
    %c0_4 = arith.constant 0 : index
    %9 = vector.load %arg0[%c2, %c0_4] : memref<7x225xf32, #tpu.memory_space<vmem>>, vector<1x225xf32>
    %c2_5 = arith.constant 2 : index
    %10 = memref.load %arg1[%c2_5] : memref<8xf32, #tpu.memory_space<smem>>
    %11 = vector.broadcast %10 : f32 to vector<1x225xf32>
    %12 = arith.mulf %9, %11 : vector<1x225xf32>
    %13 = arith.addf %8, %12 : vector<1x225xf32>
    %c3 = arith.constant 3 : index
    %c0_6 = arith.constant 0 : index
    %14 = vector.load %arg0[%c3, %c0_6] : memref<7x225xf32, #tpu.memory_space<vmem>>, vector<1x225xf32>
    %c3_7 = arith.constant 3 : index
    %15 = memref.load %arg1[%c3_7] : memref<8xf32, #tpu.memory_space<smem>>
    %16 = vector.broadcast %15 : f32 to vector<1x225xf32>
    %17 = arith.mulf %14, %16 : vector<1x225xf32>
    %18 = arith.addf %13, %17 : vector<1x225xf32>
    %c4 = arith.constant 4 : index
    %c0_8 = arith.constant 0 : index
    %19 = vector.load %arg0[%c4, %c0_8] : memref<7x225xf32, #tpu.memory_space<vmem>>, vector<1x225xf32>
    %c4_9 = arith.constant 4 : index
    %20 = memref.load %arg1[%c4_9] : memref<8xf32, #tpu.memory_space<smem>>
    %21 = vector.broadcast %20 : f32 to vector<1x225xf32>
    %22 = arith.mulf %19, %21 : vector<1x225xf32>
    %23 = arith.addf %18, %22 : vector<1x225xf32>
    %c5 = arith.constant 5 : index
    %c0_10 = arith.constant 0 : index
    %24 = vector.load %arg0[%c5, %c0_10] : memref<7x225xf32, #tpu.memory_space<vmem>>, vector<1x225xf32>
    %c5_11 = arith.constant 5 : index
    %25 = memref.load %arg1[%c5_11] : memref<8xf32, #tpu.memory_space<smem>>
    %26 = vector.broadcast %25 : f32 to vector<1x225xf32>
    %27 = arith.mulf %24, %26 : vector<1x225xf32>
    %28 = arith.addf %23, %27 : vector<1x225xf32>
    %c6 = arith.constant 6 : index
    %c0_12 = arith.constant 0 : index
    %29 = vector.load %arg0[%c6, %c0_12] : memref<7x225xf32, #tpu.memory_space<vmem>>, vector<1x225xf32>
    %c6_13 = arith.constant 6 : index
    %30 = memref.load %arg1[%c6_13] : memref<8xf32, #tpu.memory_space<smem>>
    %31 = vector.broadcast %30 : f32 to vector<1x225xf32>
    %32 = arith.mulf %29, %31 : vector<1x225xf32>
    %33 = arith.addf %28, %32 : vector<1x225xf32>
    %c7 = arith.constant 7 : index
    %34 = memref.load %arg1[%c7] : memref<8xf32, #tpu.memory_space<smem>>
    %35 = vector.broadcast %34 : f32 to vector<1x225xf32>
    %36 = arith.addf %33, %35 : vector<1x225xf32>
    %cst = arith.constant 0.000000e+00 : f32
    %37 = vector.broadcast %cst : f32 to vector<1x225xf32>
    %38 = arith.maximumf %36, %37 : vector<1x225xf32>
    %c0_14 = arith.constant 0 : index
    %c0_15 = arith.constant 0 : index
    %39 = vector.load %arg2[%c0_14, %c0_15] : memref<1x225xf32, #tpu.memory_space<vmem>>, vector<1x225xf32>
    tpu.vector_store %arg2[%c0_14, %c0_15], %38 {strides = array<i32>} : memref<1x225xf32, #tpu.memory_space<vmem>>, vector<1x225xf32>,
    return
  }
}

</mosaic_0001>

<llo_original>
// kernel: model_forward.1
$region0: #{model_forward.1}
  #allocation0 [shape = 'u32[]', space=smem, size = 0x4, offset = 0x4, fixed_abs, tag = 'smem constant byte address 0x4 - core index']
  #allocation1 [shape = 'u32[144,128]{1,0:T(1,128)}', space=vmem, size = 0x12000, scoped, tag = 'internal scratch']
  %s0 = inlined_call_operand.vmem [shape: f32[7,225], index: 0, kind: input, shape index: {}]
  %s1 = inlined_call_operand.vmem [shape: f32[8], index: 1, kind: input, shape index: {}]
  %s2 = inlined_call_operand.vmem [shape: f32[1,225], index: 2, kind: output, shape index: {}]
  %s3 = sld [smem:[#allocation0]]
  $region22: #{model_forward.1} parent=0
    _
  %s5 = ssub.s32 1, %s3
  %s6 = scalar_select 0, %s5, %s3
  $region1: #{model_forward.1} parent=0
    #allocation2 [shape = 'u8[512]{0}', space=smem, size = 0x200, scoped, tag = 'input window, operand 1, single buffered']
    #allocation3 [shape = 's32[1]{0}', space=sflag, size = 0x4, scoped, tag = 'scoped memory for model_forward.1']
    %7 = vsyncpa [#allocation3], 0
    // Predicated region
    $region2: #{model_forward.1} parent=1 // pred_check
      _
    $region3: #{model_forward.1} parent=1 // pred_check_branch
      %9 = sbr.rel (0) target = $region5
    $region4: #{model_forward.1} parent=1 // pred_region
      _
    $region5: #{model_forward.1} parent=1 // pred_fallthru
      _
    // Predicated region
    $region6: #{model_forward.1} parent=1 // pred_check
      _
    $region7: #{model_forward.1} parent=1 // pred_check_branch
      %11 = sbr.rel (0) target = $region9
    $region8: #{model_forward.1} parent=1 // pred_region
      %s13 = ssub.s32 16, 16
      %14 = vsyncadd [#allocation3], %s13
      %s16 = sshll.u32 %s1, 4
      %s17 = int_to_ptr.vmem [resolvable:$true] %s16
      %19 = dma.vmem_to_smem %s17, 16, [#allocation2], [#allocation3]
    $region9: #{model_forward.1} parent=1 // pred_fallthru
      _
    // Predicated region
    $region10: #{model_forward.1} parent=1 // pred_check
      _
    $region11: #{model_forward.1} parent=1 // pred_check_branch
      %21 = sbr.rel (0) target = $region13
    $region12: #{model_forward.1} parent=1 // pred_region
      %22 = dma.done [#allocation3], 16
    $region13: #{model_forward.1} parent=1 // pred_fallthru
      _
    %23 = sfence
    %v24 = vld [vmem:[%s0] ss:$8 sm:$0x3]
    %s25 = sld [smem:[#allocation2]]
    %v26 = vstv %s25
    %v27 = vmul.f32 %v24, %v26
    %s28 = scalar_lea.vmem %s0, 1
    %v29 = vld [vmem:[%s28] ss:$8 sm:$0x3]
    %s30 = sld [smem:[#allocation2 + $0x1]]
    %v31 = vstv %s30
    %v32 = vmul.f32 %v29, %v31
    %v33 = vadd.f32 %v27, %v32
    %s34 = scalar_lea.vmem %s0, 2
    %v35 = vld [vmem:[%s34] ss:$8 sm:$0x3]
    %s36 = sld [smem:[#allocation2 + $0x2]]
    %v37 = vstv %s36
    %v38 = vmul.f32 %v35, %v37
    %v39 = vadd.f32 %v33, %v38
    %s40 = scalar_lea.vmem %s0, 3
    %v41 = vld [vmem:[%s40] ss:$8 sm:$0x3]
    %s42 = sld [smem:[#allocation2 + $0x3]]
    %v43 = vstv %s42
    %v44 = vmul.f32 %v41, %v43
    %v45 = vadd.f32 %v39, %v44
    %s46 = scalar_lea.vmem %s0, 4
    %v47 = vld [vmem:[%s46] ss:$8 sm:$0x3]
    %s48 = sld [smem:[#allocation2 + $0x4]]
    %v49 = vstv %s48
    %v50 = vmul.f32 %v47, %v49
    %v51 = vadd.f32 %v45, %v50
    %s52 = scalar_lea.vmem %s0, 5
    %v53 = vld [vmem:[%s52] ss:$8 sm:$0x3]
    %s54 = sld [smem:[#allocation2 + $0x5]]
    %v55 = vstv %s54
    %v56 = vmul.f32 %v53, %v55
    %v57 = vadd.f32 %v51, %v56
    %s58 = scalar_lea.vmem %s0, 6
    %v59 = vld [vmem:[%s58] ss:$8 sm:$0x3]
    %s60 = sld [smem:[#allocation2 + $0x6]]
    %v61 = vstv %s60
    %v62 = vmul.f32 %v59, %v61
    %v63 = vadd.f32 %v57, %v62
    %s64 = sld [smem:[#allocation2 + $0x7]]
    %v65 = vstv %s64
    %v66 = vadd.f32 %v63, %v65
    %v67 = vmax.f32 %v66, 0.0
    %v68 = vlaneseq
    %vm69 = vcmp.ge.s32.totalorder %v68, 0
    %vm70 = vcmp.lt.s32.totalorder %v68, 225
    %vm71 = vmand %vm69, %vm70
    %72 = vst.msk [vmem:[%s2] sm:$0x3] %vm71, %v67
    // Predicated region
    $region14: #{model_forward.1} parent=1 // pred_check
      _
    $region15: #{model_forward.1} parent=1 // pred_check_branch
      %74 = sbr.rel (0) target = $region17
    $region16: #{model_forward.1} parent=1 // pred_region
      _
    $region17: #{model_forward.1} parent=1 // pred_fallthru
      _
    // Predicated region
    $region18: #{model_forward.1} parent=1 // pred_check
      _
    $region19: #{model_forward.1} parent=1 // pred_check_branch
      %76 = sbr.rel (0) target = $region21
    $region20: #{model_forward.1} parent=1 // pred_region
      _
    $region21: #{model_forward.1} parent=1 // pred_fallthru
      _
    %77 = vsyncpa [#allocation3], 1

</llo_original>
